<compile_context>
chip_gen: v6e
topology: v6e:2x2x1
jax: 0.10.0
libtpu: 0.0.40
codegen_flags: <defaults>
</compile_context>

<pallas_src>
import jax
import jax.numpy as jnp
from jax import lax
from jax.experimental import pallas as pl
from jax.experimental.pallas import tpu as pltpu


def _round_up(x: int, m: int) -> int:
    return (x + m - 1) // m * m


def _uniform01_from_index(shape, row_offset_u32, seed_u32):
    """Uniform [0,1) noise keyed on (global row, col, seed).

    Pure elementwise integer ops (VPU) + same-width bitcast, so it lowers both
    on Mosaic and in interpret mode.  Grid-invariant: element (r, c) gets the
    same random regardless of tiling, so tiling M never reuses noise.
    """
    _, h = shape
    rows = lax.broadcasted_iota(jnp.int32, shape, 0).astype(jnp.uint32)
    cols = lax.broadcasted_iota(jnp.int32, shape, 1).astype(jnp.uint32)
    x = (rows + row_offset_u32) * jnp.uint32(h) + cols
    x = x ^ seed_u32
    # murmur3-style finalizer (good avalanche, ~8 VPU ops/element)
    x = x * jnp.uint32(0x9E3779B1)
    x = x ^ (x >> jnp.uint32(16))
    x = x * jnp.uint32(0x85EBCA6B)
    x = x ^ (x >> jnp.uint32(13))
    x = x * jnp.uint32(0xC2B2AE35)
    x = x ^ (x >> jnp.uint32(16))
    # keep 23 random mantissa bits, force exponent of 1.0 -> [1,2), subtract 1
    mant = (x >> jnp.uint32(9)) | jnp.uint32(0x3F800000)
    return lax.bitcast_convert_type(mant, jnp.float32) - jnp.float32(1.0)


def _make_hype_kernel(sigma: float, tile_m: int, mxu_dtype):
    def hype_kernel(seed_ref, x_ref, w_ref, b_ref, o_ref):
        # Global row offset of this tile -> grid-invariant per-element noise.
        row0 = (pl.program_id(0) * tile_m).astype(jnp.uint32)
        seed = seed_ref[0].astype(jnp.uint32)

        eps = _uniform01_from_index(x_ref.shape, row0, seed)

        # HyPe perturbation: xs = hidden_states + sigma * eps   (f32, in vregs)
        xs = x_ref[...] + jnp.float32(sigma) * eps

        # orig(xs): Linear.  Weight arrives pre-transposed (H_in, H_out) so no
        # in-kernel transpose; bf16 MXU inputs, f32 accumulate.
        y = jnp.dot(xs.astype(mxu_dtype), w_ref[...],
                    preferred_element_type=jnp.float32)
        o_ref[...] = (y + b_ref[...]).astype(o_ref.dtype)

    return hype_kernel


def hype_layer_forward(hidden_states, weight, bias, *, sigma: float, seed: int,
                       tile_m: int = 512, mxu_dtype=jnp.bfloat16):
    """hidden_states: (B, S, H) f32
       weight:        (H, H)    f32  (PyTorch Linear convention: out x in)
       bias:          (H,)      f32
    """
    B, S, H = hidden_states.shape
    M = B * S
    x2d = hidden_states.reshape(M, H).astype(jnp.float32)

    # One-time host-side prep: transpose (feed MXU directly) and cast to bf16
    # (halves resident VMEM footprint; bf16 MXU peak on v6e/v7x).
    w_t = jnp.asarray(weight, jnp.float32).T.astype(mxu_dtype)   # (H_in, H_out)
    b2d = jnp.asarray(bias, jnp.float32).reshape(1, H)

    # Row tiling (sublane-aligned); pad M so the grid divides evenly.
    tm = min(tile_m, _round_up(M, 8))
    m_pad = _round_up(M, tm)
    if m_pad != M:
        x2d = jnp.pad(x2d, ((0, m_pad - M), (0, 0)))
    grid_m = pl.cdiv(m_pad, tm)

    seed_arr = jnp.array([seed], dtype=jnp.int32)

    # Explicit VMEM budget: 2-deep x + out streams, resident weight/bias, margin.
    f32b = 4
    vmem_bytes = (2 * 2 * tm * H * f32b
                  + 2 * H * H * jnp.dtype(mxu_dtype).itemsize
                  + 2 * H * f32b + (2 << 20))
    vmem_limit = int(min(max(vmem_bytes, 32 * 1024 * 1024), 100 * 1024 * 1024))

    out2d = pl.pallas_call(
        _make_hype_kernel(float(sigma), tm, mxu_dtype),
        out_shape=jax.ShapeDtypeStruct((m_pad, H), jnp.float32),
        grid_spec=pltpu.PrefetchScalarGridSpec(
            num_scalar_prefetch=1,
            grid=(grid_m,),
            in_specs=[
                pl.BlockSpec((tm, H), lambda i, seed: (i, 0)),   # x: streamed
                pl.BlockSpec((H, H), lambda i, seed: (0, 0)),    # W^T: resident
                pl.BlockSpec((1, H), lambda i, seed: (0, 0)),    # bias: resident
            ],
            out_specs=pl.BlockSpec((tm, H), lambda i, seed: (i, 0)),
        ),
        compiler_params=pltpu.CompilerParams(
            dimension_semantics=("parallel",),    # megacore sharding on v7x
            vmem_limit_bytes=vmem_limit,
        ),
    )(seed_arr, x2d, w_t, b2d)

    return out2d[:M].reshape(B, S, H)


if __name__ == "__main__":
    # Small shapes: batch=2, seq=8, hidden=128 (lane-aligned hidden dim).
    B, S, H = 2, 8, 128
    sigma = 0.1
    seed = 1234

    key = jax.random.PRNGKey(0)
    k_x, k_w, k_b = jax.random.split(key, 3)

    hidden_states = jax.random.normal(k_x, (B, S, H), dtype=jnp.float32)

    # Deterministic "orig" Linear parameters (PyTorch-style uniform init scale).
    bound = 1.0 / (H ** 0.5)
    weight = jax.random.uniform(k_w, (H, H), jnp.float32, -bound, bound)
    bias = jax.random.uniform(k_b, (H,), jnp.float32, -bound, bound)

    out = hype_layer_forward(hidden_states, weight, bias, sigma=sigma, seed=seed)
    out = jax.block_until_ready(out)

    # Pure-JAX reference using the exact same (grid-invariant) noise hash.
    x2d = hidden_states.reshape(B * S, H)
    eps_ref = _uniform01_from_index((B * S, H), jnp.uint32(0), jnp.uint32(seed))
    xs_ref = x2d + jnp.float32(sigma) * eps_ref
    ref = jnp.dot(xs_ref.astype(jnp.bfloat16), weight.T.astype(jnp.bfloat16),
                  preferred_element_type=jnp.float32) + bias.reshape(1, H)
    ref = ref.reshape(B, S, H)

    assert out.shape == (B, S, H)
    assert jnp.all(jnp.isfinite(out))
    assert jnp.allclose(out, ref, rtol=5e-2, atol=5e-2)
    print("KERNEL_OK")
</pallas_src>

<mosaic_0001>
module attributes {stable_mosaic.version = 11 : i64} {
  func.func @hype_kernel(%arg0: i32, %arg1: memref<1xi32, #tpu.memory_space<smem>>, %arg2: memref<16x128xf32, #tpu.memory_space<vmem>>, %arg3: memref<128x128xbf16, #tpu.memory_space<vmem>>, %arg4: memref<1x128xf32, #tpu.memory_space<vmem>>, %arg5: memref<16x128xf32, #tpu.memory_space<vmem>>) attributes {dimension_semantics = [#tpu.dimension_semantics<parallel>], iteration_bounds = array<i64: 1>, scalar_prefetch = 1 : i64, scratch_operands = 0 : i64, tpu.core_type = #tpu.core_type<tc>, window_params = [{transform_indices = @transform_0, window_bounds = array<i64: 16, 128>}, {pipeline_mode = #tpu.pipeline_mode<synchronous>, transform_indices = @transform_1, window_bounds = array<i64: 128, 128>}, {pipeline_mode = #tpu.pipeline_mode<synchronous>, transform_indices = @transform_2, window_bounds = array<i64: 1, 128>}, {transform_indices = @transform_3, window_bounds = array<i64: 16, 128>}]} {
    %c16_i32 = arith.constant 16 : i32
    %0 = arith.muli %arg0, %c16_i32 : i32
    %c0 = arith.constant 0 : index
    %1 = memref.load %arg1[%c0] : memref<1xi32, #tpu.memory_space<smem>>
    %2 = tpu.iota {dimensions = array<i32: 0>} : vector<16x128xi32>
    %3 = tpu.iota {dimensions = array<i32: 1>} : vector<16x128xi32>
    %4 = vector.broadcast %0 : i32 to vector<16x128xi32>
    %5 = arith.addi %2, %4 : vector<16x128xi32>
    %c128_i32 = arith.constant 128 : i32
    %6 = vector.broadcast %c128_i32 : i32 to vector<16x128xi32>
    %7 = arith.muli %5, %6 : vector<16x128xi32>
    %8 = arith.addi %7, %3 : vector<16x128xi32>
    %9 = vector.broadcast %1 : i32 to vector<16x128xi32>
    %10 = arith.xori %8, %9 : vector<16x128xi32>
    %c-1640531535_i32 = arith.constant -1640531535 : i32
    %11 = vector.broadcast %c-1640531535_i32 : i32 to vector<16x128xi32>
    %12 = arith.muli %10, %11 : vector<16x128xi32>
    %c16_i32_0 = arith.constant 16 : i32
    %13 = vector.broadcast %c16_i32_0 : i32 to vector<16x128xi32>
    %14 = arith.shrui %12, %13 : vector<16x128xi32>
    %15 = arith.xori %12, %14 : vector<16x128xi32>
    %c-2048144789_i32 = arith.constant -2048144789 : i32
    %16 = vector.broadcast %c-2048144789_i32 : i32 to vector<16x128xi32>
    %17 = arith.muli %15, %16 : vector<16x128xi32>
    %c13_i32 = arith.constant 13 : i32
    %18 = vector.broadcast %c13_i32 : i32 to vector<16x128xi32>
    %19 = arith.shrui %17, %18 : vector<16x128xi32>
    %20 = arith.xori %17, %19 : vector<16x128xi32>
    %c-1028477387_i32 = arith.constant -1028477387 : i32
    %21 = vector.broadcast %c-1028477387_i32 : i32 to vector<16x128xi32>
    %22 = arith.muli %20, %21 : vector<16x128xi32>
    %c16_i32_1 = arith.constant 16 : i32
    %23 = vector.broadcast %c16_i32_1 : i32 to vector<16x128xi32>
    %24 = arith.shrui %22, %23 : vector<16x128xi32>
    %25 = arith.xori %22, %24 : vector<16x128xi32>
    %c9_i32 = arith.constant 9 : i32
    %26 = vector.broadcast %c9_i32 : i32 to vector<16x128xi32>
    %27 = arith.shrui %25, %26 : vector<16x128xi32>
    %c1065353216_i32 = arith.constant 1065353216 : i32
    %28 = vector.broadcast %c1065353216_i32 : i32 to vector<16x128xi32>
    %29 = arith.ori %27, %28 : vector<16x128xi32>
    %30 = tpu.bitcast %29 : vector<16x128xi32> -> vector<16x128xf32>
    %cst = arith.constant 1.000000e+00 : f32
    %31 = vector.broadcast %cst : f32 to vector<16x128xf32>
    %32 = arith.subf %30, %31 : vector<16x128xf32>
    %c0_2 = arith.constant 0 : index
    %c0_3 = arith.constant 0 : index
    %33 = vector.load %arg2[%c0_2, %c0_3] : memref<16x128xf32, #tpu.memory_space<vmem>>, vector<16x128xf32>
    %cst_4 = arith.constant 1.000000e-01 : f32
    %34 = vector.broadcast %cst_4 : f32 to vector<16x128xf32>
    %35 = arith.mulf %34, %32 : vector<16x128xf32>
    %36 = arith.addf %33, %35 : vector<16x128xf32>
    %37 = arith.truncf %36 : vector<16x128xf32> to vector<16x128xbf16>
    %c0_5 = arith.constant 0 : index
    %c0_6 = arith.constant 0 : index
    %38 = vector.load %arg3[%c0_5, %c0_6] : memref<128x128xbf16, #tpu.memory_space<vmem>>, vector<128x128xbf16>
    %cst_7 = arith.constant dense<0.000000e+00> : vector<16x128xf32>
    %39 = tpu.matmul %37, %38, %cst_7 {dimension_numbers = #tpu.dot_dimension_numbers<[1], [0], [0], [1], [0, 0, 1, 1], [], []>} : vector<16x128xbf16>, vector<128x128xbf16>, vector<16x128xf32> -> vector<16x128xf32>
    %c0_8 = arith.constant 0 : index
    %c0_9 = arith.constant 0 : index
    %40 = vector.load %arg4[%c0_8, %c0_9] : memref<1x128xf32, #tpu.memory_space<vmem>>, vector<1x128xf32>
    %41 = vector.broadcast %40 : vector<1x128xf32> to vector<16x128xf32>
    %42 = arith.addf %39, %41 : vector<16x128xf32>
    %c0_10 = arith.constant 0 : index
    %c0_11 = arith.constant 0 : index
    %43 = vector.load %arg5[%c0_10, %c0_11] : memref<16x128xf32, #tpu.memory_space<vmem>>, vector<16x128xf32>
    tpu.vector_store %arg5[%c0_10, %c0_11], %42 {strides = array<i32>} : memref<16x128xf32, #tpu.memory_space<vmem>>, vector<16x128xf32>,
    return
  }
  func.func @transform_0(%arg0: i32, %arg1: memref<1xi32, #tpu.memory_space<smem>>) -> (i32, i32) {
    %c0_i32 = arith.constant 0 : i32
    %c0_i32_0 = arith.constant 0 : i32
    return %arg0, %c0_i32 : i32, i32
  }
  func.func @transform_1(%arg0: i32, %arg1: memref<1xi32, #tpu.memory_space<smem>>) -> (i32, i32) {
    %c0_i32 = arith.constant 0 : i32
    %c0_i32_0 = arith.constant 0 : i32
    %c0_i32_1 = arith.constant 0 : i32
    return %c0_i32, %c0_i32_0 : i32, i32
  }
  func.func @transform_2(%arg0: i32, %arg1: memref<1xi32, #tpu.memory_space<smem>>) -> (i32, i32) {
    %c0_i32 = arith.constant 0 : i32
    %c0_i32_0 = arith.constant 0 : i32
    %c0_i32_1 = arith.constant 0 : i32
    return %c0_i32, %c0_i32_0 : i32, i32
  }
  func.func @transform_3(%arg0: i32, %arg1: memref<1xi32, #tpu.memory_space<smem>>) -> (i32, i32) {
    %c0_i32 = arith.constant 0 : i32
    %c0_i32_0 = arith.constant 0 : i32
    return %arg0, %c0_i32 : i32, i32
  }
}

</mosaic_0001>

<llo_original>
// kernel: tpu_custom_call.1
$region0: #{tpu_custom_call.1}
  #allocation0 [shape = 'u32[]', space=smem, size = 0x4, offset = 0x4, fixed_abs, tag = 'smem constant byte address 0x4 - core index']
  #allocation1 [shape = 'u32[144,128]{1,0:T(1,128)}', space=vmem, size = 0x12000, scoped, tag = 'internal scratch']
  #allocation2 [shape = 's32[1]{0}', space=sflag, size = 0x4, scoped, tag = 'scoped memory for tpu_custom_call.1']
  #allocation3 [shape = 's32[1]{0:T(128)S(6)}', space=smem, size = 0x200, scoped, tag = 'prefetched SMEM operand 0']
  %s0 = inlined_call_operand.<no memory space> [shape: s32[1], index: 0, kind: input, shape index: {}]
  %s1 = inlined_call_operand.hbm [shape: f32[16,128], index: 1, kind: input, shape index: {}]
  %s2 = inlined_call_operand.hbm [shape: bf16[128,128], index: 2, kind: input, shape index: {}]
  %s3 = inlined_call_operand.vmem [shape: f32[1,128], index: 3, kind: input, shape index: {}]
  %s4 = inlined_call_operand.hbm [shape: f32[16,128], index: 4, kind: output, shape index: {}]
  %s5 = sld [smem:[#allocation0]]
  $region30: #{tpu_custom_call.1} parent=0
    _
  %s7 = ssub.s32 1, %s5
  %s8 = scalar_select 0, %s7, %s5
  %9 = sst [smem:[#allocation3]] %s0
  $region1: #{tpu_custom_call.1} parent=0
    #allocation4 [shape = 'u8[8192]{0}', space=vmem, size = 0x2000, scoped, tag = 'input window, operand 1, single buffered']
    #allocation5 [shape = 's32[1]{0}', space=sflag, size = 0x4, scoped, tag = 'scoped memory for tpu_custom_call.1']
    #allocation6 [shape = 's32[1]{0}', space=sflag, size = 0x4, scoped, tag = 'scoped memory for tpu_custom_call.1']
    #allocation7 [shape = 'u8[32768]{0}', space=vmem, size = 0x8000, scoped, tag = 'input window, operand 2, single buffered']
    #allocation8 [shape = 's32[1]{0}', space=sflag, size = 0x4, scoped, tag = 'scoped memory for tpu_custom_call.1']
    #allocation9 [shape = 'u8[8192]{0}', space=vmem, size = 0x2000, scoped, tag = 'output window, operand 0, single buffered']
    %10 = vsyncpa [#allocation5], 0
    %11 = vsyncpa [#allocation8], 0
    %12 = vsyncpa [#allocation6], 0
    // Predicated region
    $region2: #{tpu_custom_call.1} parent=1 // pred_check
      _
    $region3: #{tpu_custom_call.1} parent=1 // pred_check_branch
      %14 = sbr.rel (0) target = $region5
    $region4: #{tpu_custom_call.1} parent=1 // pred_region
      %s16 = ssub.s32 256, 256
      %17 = vsyncadd [#allocation5], %s16
      %s18 = sshll.u32 [#allocation4], 4
      %s19 = int_to_ptr.vmem [resolvable:$true] %s18
      %24 = dma.hbm_to_vmem [thread:$0]  %s1, 256, %s19, [#allocation5], 128, 128, 8
    $region5: #{tpu_custom_call.1} parent=1 // pred_fallthru
      _
    // Predicated region
    $region6: #{tpu_custom_call.1} parent=1 // pred_check
      _
    $region7: #{tpu_custom_call.1} parent=1 // pred_check_branch
      %26 = sbr.rel (0) target = $region9
    $region8: #{tpu_custom_call.1} parent=1 // pred_region
      %s28 = ssub.s32 1024, 1024
      %29 = vsyncadd [#allocation8], %s28
      %s30 = sshll.u32 [#allocation7], 4
      %s31 = int_to_ptr.vmem [resolvable:$true] %s30
      %36 = dma.hbm_to_vmem [thread:$0]  %s2, 1024, %s31, [#allocation8], 64, 64, 4
    $region9: #{tpu_custom_call.1} parent=1 // pred_fallthru
      _
    // Predicated region
    $region10: #{tpu_custom_call.1} parent=1 // pred_check
      _
    $region11: #{tpu_custom_call.1} parent=1 // pred_check_branch
      %38 = sbr.rel (0) target = $region13
    $region12: #{tpu_custom_call.1} parent=1 // pred_region
      _
    $region13: #{tpu_custom_call.1} parent=1 // pred_fallthru
      _
    // Predicated region
    $region14: #{tpu_custom_call.1} parent=1 // pred_check
      _
    $region15: #{tpu_custom_call.1} parent=1 // pred_check_branch
      %40 = sbr.rel (0) target = $region17
    $region16: #{tpu_custom_call.1} parent=1 // pred_region
      %41 = dma.done [#allocation5], 256
    $region17: #{tpu_custom_call.1} parent=1 // pred_fallthru
      _
    // Predicated region
    $region18: #{tpu_custom_call.1} parent=1 // pred_check
      _
    $region19: #{tpu_custom_call.1} parent=1 // pred_check_branch
      %43 = sbr.rel (0) target = $region21
    $region20: #{tpu_custom_call.1} parent=1 // pred_region
      %44 = dma.done [#allocation8], 1024
    $region21: #{tpu_custom_call.1} parent=1 // pred_fallthru
      _
    %s46 = smul.u32 0, 16
    %s47 = sld [smem:[#allocation3]]
    %v48 = vlaneseq
    %v49 = vshrl.u32 %v48, 7
    %v50 = vadd.s32 %v49, 8
    %v51 = vlaneseq
    %v52 = vand.u32 %v51, 127
    %v53 = vstv %s46
    %v54 = vadd.s32 %v49, %v53
    %v55 = vadd.s32 %v50, %v53
    %v56 = vmul.u32 %v54, 128
    %v57 = vmul.u32 %v55, 128
    %v58 = vadd.s32 %v56, %v52
    %v59 = vadd.s32 %v57, %v52
    %v60 = vstv %s47
    %v61 = vxor.u32 %v58, %v60
    %v62 = vxor.u32 %v59, %v60
    %v63 = vmul.u32 %v61, 2654435761
    %v64 = vmul.u32 %v62, 2654435761
    %v65 = vshrl.u32 %v63, 16
    %v66 = vshrl.u32 %v64, 16
    %v67 = vxor.u32 %v63, %v65
    %v68 = vxor.u32 %v64, %v66
    %v69 = vmul.u32 %v67, 2246822507
    %v70 = vmul.u32 %v68, 2246822507
    %v71 = vshrl.u32 %v69, 13
    %v72 = vshrl.u32 %v70, 13
    %v73 = vxor.u32 %v69, %v71
    %v74 = vxor.u32 %v70, %v72
    %v75 = vmul.u32 %v73, 3266489909
    %v76 = vmul.u32 %v74, 3266489909
    %v77 = vshrl.u32 %v75, 16
    %v78 = vshrl.u32 %v76, 16
    %v79 = vxor.u32 %v75, %v77
    %v80 = vxor.u32 %v76, %v78
    %v81 = vshrl.u32 %v79, 9
    %v82 = vshrl.u32 %v80, 9
    %v83 = vor.u32 %v81, 1065353216
    %v84 = vor.u32 %v82, 1065353216
    %v87 = vsub.f32 %v83, 1.0
    %v88 = vsub.f32 %v84, 1.0
    %v89 = vld [vmem:[#allocation4] sm:$0xff]
    %v90 = vld [vmem:[#allocation4 + $0x8] sm:$0xff]
    %v91 = vmul.f32 %v87, 0.1
    %v92 = vmul.f32 %v88, 0.1
    %v93 = vadd.f32 %v89, %v91
    %v94 = vadd.f32 %v90, %v92
    %v95 = vpack.c.bf16 %v94, %v93
    %v96 = vld [vmem:[#allocation7] sm:$0xf]
    %v97 = vld [vmem:[#allocation7 + $0x4] sm:$0xf]
    %v98 = vld [vmem:[#allocation7 + $0x8] sm:$0xf]
    %v99 = vld [vmem:[#allocation7 + $0xc] sm:$0xf]
    %v100 = vld [vmem:[#allocation7 + $0x10] sm:$0xf]
    %v101 = vld [vmem:[#allocation7 + $0x14] sm:$0xf]
    %v102 = vld [vmem:[#allocation7 + $0x18] sm:$0xf]
    %v103 = vld [vmem:[#allocation7 + $0x1c] sm:$0xf]
    %v104 = vld [vmem:[#allocation7 + $0x20] sm:$0xf]
    %v105 = vld [vmem:[#allocation7 + $0x24] sm:$0xf]
    %v106 = vld [vmem:[#allocation7 + $0x28] sm:$0xf]
    %v107 = vld [vmem:[#allocation7 + $0x2c] sm:$0xf]
    %v108 = vld [vmem:[#allocation7 + $0x30] sm:$0xf]
    %v109 = vld [vmem:[#allocation7 + $0x34] sm:$0xf]
    %v110 = vld [vmem:[#allocation7 + $0x38] sm:$0xf]
    %v111 = vld [vmem:[#allocation7 + $0x3c] sm:$0xf]
    %v112 = vld [vmem:[%s3] sm:$0x1]
    %v114 = vlaneseq
    %v115 = vshrl.u32 %v114, 7
    %v116 = vsub.s32 0, %v115
    %v117 = vrot.slane %v112, %v116
    %v135 = vunpack.c.l.b16 %v96
    %v136 = vunpack.c.l.b16 %v97
    %v137 = vunpack.c.l.b16 %v98
    %v138 = vunpack.c.l.b16 %v99
    %v139 = vunpack.c.l.b16 %v100
    %v140 = vunpack.c.l.b16 %v101
    %v141 = vunpack.c.l.b16 %v102
    %v142 = vunpack.c.l.b16 %v103
    %v143 = vunpack.c.l.b16 %v104
    %v144 = vunpack.c.l.b16 %v105
    %v145 = vunpack.c.l.b16 %v106
    %v146 = vunpack.c.l.b16 %v107
    %v147 = vunpack.c.l.b16 %v108
    %v148 = vunpack.c.l.b16 %v109
    %v149 = vunpack.c.l.b16 %v110
    %v150 = vunpack.c.l.b16 %v111
    %v151 = vpack.c.b16 %v136, %v135
    %v152 = vpack.c.b16 %v138, %v137
    %v153 = vpack.c.b16 %v140, %v139
    %v154 = vpack.c.b16 %v142, %v141
    %v155 = vpack.c.b16 %v144, %v143
    %v156 = vpack.c.b16 %v146, %v145
    %v157 = vpack.c.b16 %v148, %v147
    %v158 = vpack.c.b16 %v150, %v149
    %167 = vmatprep.subr.bf16.mxu0 0
    %168 = vmatpush1.bf16.msra.mxu0 %v158
    %169 = vmatprep.subr.bf16.mxu0 0
    %170 = vmatpush1.bf16.msra.mxu0 %v157
    %171 = vmatprep.subr.bf16.mxu0 0
    %172 = vmatpush1.bf16.msra.mxu0 %v156
    %173 = vmatprep.subr.bf16.mxu0 0
    %174 = vmatpush1.bf16.msra.mxu0 %v155
    %175 = vmatprep.subr.bf16.mxu0 0
    %176 = vmatpush1.bf16.msra.mxu0 %v154
    %177 = vmatprep.subr.bf16.mxu0 0
    %178 = vmatpush1.bf16.msra.mxu0 %v153
    %179 = vmatprep.subr.bf16.mxu0 0
    %180 = vmatpush1.bf16.msra.mxu0 %v152
    %181 = vmatprep.subr.bf16.mxu0 0
    %182 = vmatpush1.bf16.msra.mxu0 %v151
    %183 = vmatprep.subr.bf16.mxu0 0
    %184 = vmatpush2.bf16.msra.mxu0 0
    %185 = vmatprep.subr.bf16.mxu0 0
    %186 = vmatpush2.bf16.msra.mxu0 0
    %187 = vmatprep.subr.bf16.mxu0 0
    %188 = vmatpush2.bf16.msra.mxu0 0
    %189 = vmatprep.subr.bf16.mxu0 0
    %190 = vmatpush2.bf16.msra.mxu0 0
    %191 = vmatprep.subr.bf16.mxu0 0
    %192 = vmatpush2.bf16.msra.mxu0 0
    %193 = vmatprep.subr.bf16.mxu0 0
    %194 = vmatpush2.bf16.msra.mxu0 0
    %195 = vmatprep.subr.bf16.mxu0 0
    %196 = vmatpush2.bf16.msra.mxu0 0
    %197 = vmatprep.subr.bf16.mxu0 0
    %198 = vmatpush2.bf16.msra.mxu0 0
    %199 = vmatprep.mubr.bf16.mxu0 0
    %200 = vmatmul.mubr.bf16.gmra.mxu0 %v95
    %v201 = vpop.f32.mrf.mxu0
    %v202 = vadd.f32 %v117, %v201
    %v203 = vpop.f32.mrf.mxu0
    %v204 = vpop.f32.mrf.mxu0
    %v205 = vadd.f32 %v117, %v204
    %v206 = vpop.f32.mrf.mxu0
    %207 = vdwg.mxu0
    %208 = vst [vmem:[#allocation9] sm:$0xff] %v202
    %209 = vst [vmem:[#allocation9 + $0x8] sm:$0xff] %v205
    // Predicated region
    $region22: #{tpu_custom_call.1} parent=1 // pred_check
      _
    $region23: #{tpu_custom_call.1} parent=1 // pred_check_branch
      %211 = sbr.rel (0) target = $region25
    $region24: #{tpu_custom_call.1} parent=1 // pred_region
      %s213 = ssub.s32 256, 256
      %214 = vsyncadd [#allocation6], %s213
      %s215 = sshll.u32 [#allocation9], 4
      %s216 = int_to_ptr.vmem [resolvable:$true] %s215
      %221 = dma.vmem_to_hbm [thread:$0]  %s216, 256, %s4, [#allocation6], 128, 128, 8
    $region25: #{tpu_custom_call.1} parent=1 // pred_fallthru
      _
    // Predicated region
    $region26: #{tpu_custom_call.1} parent=1 // pred_check
      _
    $region27: #{tpu_custom_call.1} parent=1 // pred_check_branch
      %223 = sbr.rel (0) target = $region29
    $region28: #{tpu_custom_call.1} parent=1 // pred_region
      %224 = dma.done [#allocation6], 256
    $region29: #{tpu_custom_call.1} parent=1 // pred_fallthru
      _
    %225 = vsyncpa [#allocation5], 1
    %226 = vsyncpa [#allocation8], 1
    %227 = vsyncpa [#allocation6], 1

</llo_original>
